<compile_context>
chip_gen: v5e
topology: v5e:2x2
jax: 0.10.0
libtpu: 0.0.40
codegen_flags: <defaults>
</compile_context>

<pallas_src>
import functools

import jax
import jax.numpy as jnp
import numpy as np
from jax import lax
from jax.experimental import pallas as pl
from jax.experimental.pallas import tpu as pltpu


def _conv_add_relu_kernel(x0_ref, x1_ref, x2_ref, w_ref, o_ref, *, w_out, o_pad):
    # x{0,1,2}_ref : (W+2, C)  padded NHWC input rows y+0, y+1, y+2
    # w_ref        : (9, C, 2*o_pad)  fused [w1 | w2] weights, tap-major (kh, kw)
    # o_ref        : (W, o_pad)  one output row, channel-padded (lane-dense)
    rows = (x0_ref, x1_ref, x2_ref)
    acc = None
    for kh in range(3):
        x = rows[kh][...]                                  # (W+2, C)
        for kw in range(3):
            lhs = x[kw:kw + w_out, :]                      # (W, C) shifted slice
            rhs = w_ref[kh * 3 + kw]                       # (C, 2*o_pad)
            d = jnp.dot(lhs, rhs, preferred_element_type=jnp.float32)
            acc = d if acc is None else acc + d
    a = jnp.maximum(acc[:, :o_pad], 0.0)                   # relu(conv1(x))
    b = acc[:, o_pad:]                                     # conv2(x)
    o_ref[...] = jnp.maximum(a + b, 0.0).astype(o_ref.dtype)


def _round_up(v, m):
    return (v + m - 1) // m * m


@functools.partial(jax.jit, static_argnames=("compute_dtype",))
def ipex_conv_add_relu(x_nchw, w1_oihw, w2_oihw, *, compute_dtype=None):
    n, c, h, w = x_nchw.shape
    o, ci, kh, kw = w1_oihw.shape
    assert ci == c and (kh, kw) == (3, 3), "kernel expects 3x3 conv weights"
    out_dtype = x_nchw.dtype
    cdtype = out_dtype if compute_dtype is None else compute_dtype

    o_pad = _round_up(o, 128)                    # lane-dense output channels

    # NCHW -> NHWC + spatial zero pad (the only wrapper-side data movement;
    # no im2col patch matrix is ever materialized in HBM).
    x_nhwc = jnp.transpose(x_nchw, (0, 2, 3, 1))
    x_pad = jnp.pad(x_nhwc, ((0, 0), (1, 1), (1, 1), (0, 0))).astype(cdtype)

    # OIHW -> (KH, KW, C, O), zero-pad O -> o_pad, fuse [w1 | w2] along the
    # output-channel axis, flatten taps: (9, C, 2*o_pad).
    def prep(w_oihw):
        wt = jnp.transpose(w_oihw, (2, 3, 1, 0))            # (KH, KW, C, O)
        return jnp.pad(wt, ((0, 0), (0, 0), (0, 0), (0, o_pad - o)))

    w_cat = jnp.concatenate([prep(w1_oihw), prep(w2_oihw)], axis=-1)
    w_cat = w_cat.reshape(kh * kw, c, 2 * o_pad).astype(cdtype)

    # Explicit VMEM budget (double-buffered input rows + resident fused
    # weights + output row), with headroom; clamped to a safe range for
    # v5e (16 MiB scoped default) .. v7x (64 MiB physical).
    csize = jnp.dtype(cdtype).itemsize
    osize = jnp.dtype(out_dtype).itemsize
    est = (3 * (w + 2) * c * csize
           + kh * kw * c * 2 * o_pad * csize
           + w * o_pad * osize)
    vmem_limit = int(min(48 * 2**20, max(16 * 2**20, 8 * est)))

    kernel = functools.partial(_conv_add_relu_kernel, w_out=w, o_pad=o_pad)

    def x_spec(dy):
        # Three halo-row views over the SAME padded array (row y+dy).
        return pl.BlockSpec((None, None, w + 2, c),
                            lambda ni, yi, dy=dy: (ni, yi + dy, 0, 0))

    out_padded = pl.pallas_call(
        kernel,
        out_shape=jax.ShapeDtypeStruct((n, h, w, o_pad), out_dtype),
        grid_spec=pltpu.PrefetchScalarGridSpec(
            num_scalar_prefetch=0,
            grid=(n, h),
            in_specs=[
                x_spec(0), x_spec(1), x_spec(2),
                pl.BlockSpec((kh * kw, c, 2 * o_pad),
                             lambda ni, yi: (0, 0, 0)),     # resident weights
            ],
            out_specs=pl.BlockSpec((None, None, w, o_pad),
                                   lambda ni, yi: (ni, yi, 0, 0)),
        ),
        compiler_params=pltpu.CompilerParams(
            dimension_semantics=("parallel", "parallel"),
            vmem_limit_bytes=vmem_limit),
    )(x_pad, x_pad, x_pad, w_cat)

    # Drop channel padding, NHWC -> NCHW to match the PyTorch module.
    return jnp.transpose(out_padded[..., :o], (0, 3, 1, 2))


def _reference(x_nchw, w1, w2):
    dn = ("NCHW", "OIHW", "NCHW")
    conv = lambda xx, ww: lax.conv_general_dilated(
        xx, ww, window_strides=(1, 1), padding=((1, 1), (1, 1)),
        dimension_numbers=dn)
    a = jnp.maximum(conv(x_nchw, w1), 0.0)
    b = conv(x_nchw, w2)
    return jnp.maximum(a + b, 0.0)


if __name__ == "__main__":
    key = jax.random.PRNGKey(0)
    kx, k1, k2 = jax.random.split(key, 3)

    N, C_IN, C_OUT, H, W = 2, 4, 8, 16, 16
    KH = KW = 3

    x = jax.random.normal(kx, (N, C_IN, H, W), dtype=jnp.float32)
    # Deterministic "Conv2d" weights, shape (out_channels, in_channels, kh, kw).
    w1 = jax.random.normal(k1, (C_OUT, C_IN, KH, KW), dtype=jnp.float32) * 0.1
    w2 = jax.random.normal(k2, (C_OUT, C_IN, KH, KW), dtype=jnp.float32) * 0.1

    ref = jax.block_until_ready(_reference(x, w1, w2))

    # f32 path (exact semantics of the PyTorch module).
    out = jax.block_until_ready(ipex_conv_add_relu(x, w1, w2))
    np.testing.assert_allclose(np.asarray(out), np.asarray(ref),
                               rtol=1e-5, atol=1e-5)

    # bf16 MXU fast path (v6e/v7x native-bf16 MXU, f32 accumulation).
    out_bf16 = jax.block_until_ready(
        ipex_conv_add_relu(x, w1, w2, compute_dtype=jnp.bfloat16))
    np.testing.assert_allclose(np.asarray(out_bf16), np.asarray(ref),
                               rtol=5e-2, atol=1e-1)

    print("KERNEL_OK")
</pallas_src>

<mosaic_0001>
module attributes {stable_mosaic.version = 11 : i64} {
  func.func @_conv_add_relu_kernel(%arg0: i32, %arg1: i32, %arg2: memref<1x1x18x4xf32, #tpu.memory_space<vmem>>, %arg3: memref<1x1x18x4xf32, #tpu.memory_space<vmem>>, %arg4: memref<1x1x18x4xf32, #tpu.memory_space<vmem>>, %arg5: memref<9x4x256xf32, #tpu.memory_space<vmem>>, %arg6: memref<1x1x16x128xf32, #tpu.memory_space<vmem>>) attributes {dimension_semantics = [#tpu.dimension_semantics<parallel>, #tpu.dimension_semantics<parallel>], iteration_bounds = array<i64: 2, 16>, scalar_prefetch = 0 : i64, scratch_operands = 0 : i64, tpu.core_type = #tpu.core_type<tc>, window_params = [{transform_indices = @transform_0, window_bounds = array<i64: 1, 1, 18, 4>}, {transform_indices = @transform_1, window_bounds = array<i64: 1, 1, 18, 4>}, {transform_indices = @transform_2, window_bounds = array<i64: 1, 1, 18, 4>}, {pipeline_mode = #tpu.pipeline_mode<synchronous>, transform_indices = @transform_3, window_bounds = array<i64: 9, 4, 256>}, {transform_indices = @transform_4, window_bounds = array<i64: 1, 1, 16, 128>}]} {
    %c0 = arith.constant 0 : index
    %c0_0 = arith.constant 0 : index
    %c0_1 = arith.constant 0 : index
    %c0_2 = arith.constant 0 : index
    %0 = vector.load %arg2[%c0, %c0_0, %c0_1, %c0_2] : memref<1x1x18x4xf32, #tpu.memory_space<vmem>>, vector<1x1x18x4xf32>
    %1 = vector.shape_cast %0 : vector<1x1x18x4xf32> to vector<18x4xf32>
    %2 = vector.extract_strided_slice %1 {offsets = [0, 0], sizes = [16, 4], strides = [1, 1]} : vector<18x4xf32> to vector<16x4xf32>
    %c0_3 = arith.constant 0 : index
    %c0_4 = arith.constant 0 : index
    %c0_5 = arith.constant 0 : index
    %3 = vector.load %arg5[%c0_3, %c0_4, %c0_5] : memref<9x4x256xf32, #tpu.memory_space<vmem>>, vector<1x4x256xf32>
    %4 = vector.shape_cast %3 : vector<1x4x256xf32> to vector<4x256xf32>
    %cst = arith.constant dense<0.000000e+00> : vector<16x256xf32>
    %5 = tpu.matmul %2, %4, %cst {dimension_numbers = #tpu.dot_dimension_numbers<[1], [0], [0], [1], [0, 0, 1, 1], [], []>} : vector<16x4xf32>, vector<4x256xf32>, vector<16x256xf32> -> vector<16x256xf32>
    %6 = vector.extract_strided_slice %1 {offsets = [1, 0], sizes = [16, 4], strides = [1, 1]} : vector<18x4xf32> to vector<16x4xf32>
    %c1 = arith.constant 1 : index
    %c0_6 = arith.constant 0 : index
    %c0_7 = arith.constant 0 : index
    %7 = vector.load %arg5[%c1, %c0_6, %c0_7] : memref<9x4x256xf32, #tpu.memory_space<vmem>>, vector<1x4x256xf32>
    %8 = vector.shape_cast %7 : vector<1x4x256xf32> to vector<4x256xf32>
    %cst_8 = arith.constant dense<0.000000e+00> : vector<16x256xf32>
    %9 = tpu.matmul %6, %8, %cst_8 {dimension_numbers = #tpu.dot_dimension_numbers<[1], [0], [0], [1], [0, 0, 1, 1], [], []>} : vector<16x4xf32>, vector<4x256xf32>, vector<16x256xf32> -> vector<16x256xf32>
    %10 = arith.addf %5, %9 : vector<16x256xf32>
    %11 = vector.extract_strided_slice %1 {offsets = [2, 0], sizes = [16, 4], strides = [1, 1]} : vector<18x4xf32> to vector<16x4xf32>
    %c2 = arith.constant 2 : index
    %c0_9 = arith.constant 0 : index
    %c0_10 = arith.constant 0 : index
    %12 = vector.load %arg5[%c2, %c0_9, %c0_10] : memref<9x4x256xf32, #tpu.memory_space<vmem>>, vector<1x4x256xf32>
    %13 = vector.shape_cast %12 : vector<1x4x256xf32> to vector<4x256xf32>
    %cst_11 = arith.constant dense<0.000000e+00> : vector<16x256xf32>
    %14 = tpu.matmul %11, %13, %cst_11 {dimension_numbers = #tpu.dot_dimension_numbers<[1], [0], [0], [1], [0, 0, 1, 1], [], []>} : vector<16x4xf32>, vector<4x256xf32>, vector<16x256xf32> -> vector<16x256xf32>
    %15 = arith.addf %10, %14 : vector<16x256xf32>
    %c0_12 = arith.constant 0 : index
    %c0_13 = arith.constant 0 : index
    %c0_14 = arith.constant 0 : index
    %c0_15 = arith.constant 0 : index
    %16 = vector.load %arg3[%c0_12, %c0_13, %c0_14, %c0_15] : memref<1x1x18x4xf32, #tpu.memory_space<vmem>>, vector<1x1x18x4xf32>
    %17 = vector.shape_cast %16 : vector<1x1x18x4xf32> to vector<18x4xf32>
    %18 = vector.extract_strided_slice %17 {offsets = [0, 0], sizes = [16, 4], strides = [1, 1]} : vector<18x4xf32> to vector<16x4xf32>
    %c3 = arith.constant 3 : index
    %c0_16 = arith.constant 0 : index
    %c0_17 = arith.constant 0 : index
    %19 = vector.load %arg5[%c3, %c0_16, %c0_17] : memref<9x4x256xf32, #tpu.memory_space<vmem>>, vector<1x4x256xf32>
    %20 = vector.shape_cast %19 : vector<1x4x256xf32> to vector<4x256xf32>
    %cst_18 = arith.constant dense<0.000000e+00> : vector<16x256xf32>
    %21 = tpu.matmul %18, %20, %cst_18 {dimension_numbers = #tpu.dot_dimension_numbers<[1], [0], [0], [1], [0, 0, 1, 1], [], []>} : vector<16x4xf32>, vector<4x256xf32>, vector<16x256xf32> -> vector<16x256xf32>
    %22 = arith.addf %15, %21 : vector<16x256xf32>
    %23 = vector.extract_strided_slice %17 {offsets = [1, 0], sizes = [16, 4], strides = [1, 1]} : vector<18x4xf32> to vector<16x4xf32>
    %c4 = arith.constant 4 : index
    %c0_19 = arith.constant 0 : index
    %c0_20 = arith.constant 0 : index
    %24 = vector.load %arg5[%c4, %c0_19, %c0_20] : memref<9x4x256xf32, #tpu.memory_space<vmem>>, vector<1x4x256xf32>
    %25 = vector.shape_cast %24 : vector<1x4x256xf32> to vector<4x256xf32>
    %cst_21 = arith.constant dense<0.000000e+00> : vector<16x256xf32>
    %26 = tpu.matmul %23, %25, %cst_21 {dimension_numbers = #tpu.dot_dimension_numbers<[1], [0], [0], [1], [0, 0, 1, 1], [], []>} : vector<16x4xf32>, vector<4x256xf32>, vector<16x256xf32> -> vector<16x256xf32>
    %27 = arith.addf %22, %26 : vector<16x256xf32>
    %28 = vector.extract_strided_slice %17 {offsets = [2, 0], sizes = [16, 4], strides = [1, 1]} : vector<18x4xf32> to vector<16x4xf32>
    %c5 = arith.constant 5 : index
    %c0_22 = arith.constant 0 : index
    %c0_23 = arith.constant 0 : index
    %29 = vector.load %arg5[%c5, %c0_22, %c0_23] : memref<9x4x256xf32, #tpu.memory_space<vmem>>, vector<1x4x256xf32>
    %30 = vector.shape_cast %29 : vector<1x4x256xf32> to vector<4x256xf32>
    %cst_24 = arith.constant dense<0.000000e+00> : vector<16x256xf32>
    %31 = tpu.matmul %28, %30, %cst_24 {dimension_numbers = #tpu.dot_dimension_numbers<[1], [0], [0], [1], [0, 0, 1, 1], [], []>} : vector<16x4xf32>, vector<4x256xf32>, vector<16x256xf32> -> vector<16x256xf32>
    %32 = arith.addf %27, %31 : vector<16x256xf32>
    %c0_25 = arith.constant 0 : index
    %c0_26 = arith.constant 0 : index
    %c0_27 = arith.constant 0 : index
    %c0_28 = arith.constant 0 : index
    %33 = vector.load %arg4[%c0_25, %c0_26, %c0_27, %c0_28] : memref<1x1x18x4xf32, #tpu.memory_space<vmem>>, vector<1x1x18x4xf32>
    %34 = vector.shape_cast %33 : vector<1x1x18x4xf32> to vector<18x4xf32>
    %35 = vector.extract_strided_slice %34 {offsets = [0, 0], sizes = [16, 4], strides = [1, 1]} : vector<18x4xf32> to vector<16x4xf32>
    %c6 = arith.constant 6 : index
    %c0_29 = arith.constant 0 : index
    %c0_30 = arith.constant 0 : index
    %36 = vector.load %arg5[%c6, %c0_29, %c0_30] : memref<9x4x256xf32, #tpu.memory_space<vmem>>, vector<1x4x256xf32>
    %37 = vector.shape_cast %36 : vector<1x4x256xf32> to vector<4x256xf32>
    %cst_31 = arith.constant dense<0.000000e+00> : vector<16x256xf32>
    %38 = tpu.matmul %35, %37, %cst_31 {dimension_numbers = #tpu.dot_dimension_numbers<[1], [0], [0], [1], [0, 0, 1, 1], [], []>} : vector<16x4xf32>, vector<4x256xf32>, vector<16x256xf32> -> vector<16x256xf32>
    %39 = arith.addf %32, %38 : vector<16x256xf32>
    %40 = vector.extract_strided_slice %34 {offsets = [1, 0], sizes = [16, 4], strides = [1, 1]} : vector<18x4xf32> to vector<16x4xf32>
    %c7 = arith.constant 7 : index
    %c0_32 = arith.constant 0 : index
    %c0_33 = arith.constant 0 : index
    %41 = vector.load %arg5[%c7, %c0_32, %c0_33] : memref<9x4x256xf32, #tpu.memory_space<vmem>>, vector<1x4x256xf32>
    %42 = vector.shape_cast %41 : vector<1x4x256xf32> to vector<4x256xf32>
    %cst_34 = arith.constant dense<0.000000e+00> : vector<16x256xf32>
    %43 = tpu.matmul %40, %42, %cst_34 {dimension_numbers = #tpu.dot_dimension_numbers<[1], [0], [0], [1], [0, 0, 1, 1], [], []>} : vector<16x4xf32>, vector<4x256xf32>, vector<16x256xf32> -> vector<16x256xf32>
    %44 = arith.addf %39, %43 : vector<16x256xf32>
    %45 = vector.extract_strided_slice %34 {offsets = [2, 0], sizes = [16, 4], strides = [1, 1]} : vector<18x4xf32> to vector<16x4xf32>
    %c8 = arith.constant 8 : index
    %c0_35 = arith.constant 0 : index
    %c0_36 = arith.constant 0 : index
    %46 = vector.load %arg5[%c8, %c0_35, %c0_36] : memref<9x4x256xf32, #tpu.memory_space<vmem>>, vector<1x4x256xf32>
    %47 = vector.shape_cast %46 : vector<1x4x256xf32> to vector<4x256xf32>
    %cst_37 = arith.constant dense<0.000000e+00> : vector<16x256xf32>
    %48 = tpu.matmul %45, %47, %cst_37 {dimension_numbers = #tpu.dot_dimension_numbers<[1], [0], [0], [1], [0, 0, 1, 1], [], []>} : vector<16x4xf32>, vector<4x256xf32>, vector<16x256xf32> -> vector<16x256xf32>
    %49 = arith.addf %44, %48 : vector<16x256xf32>
    %50 = vector.extract_strided_slice %49 {offsets = [0, 0], sizes = [16, 128], strides = [1, 1]} : vector<16x256xf32> to vector<16x128xf32>
    %cst_38 = arith.constant 0.000000e+00 : f32
    %51 = vector.broadcast %cst_38 : f32 to vector<16x128xf32>
    %52 = arith.maximumf %50, %51 : vector<16x128xf32>
    %53 = vector.extract_strided_slice %49 {offsets = [0, 128], sizes = [16, 128], strides = [1, 1]} : vector<16x256xf32> to vector<16x128xf32>
    %54 = arith.addf %52, %53 : vector<16x128xf32>
    %cst_39 = arith.constant 0.000000e+00 : f32
    %55 = vector.broadcast %cst_39 : f32 to vector<16x128xf32>
    %56 = arith.maximumf %54, %55 : vector<16x128xf32>
    %c0_40 = arith.constant 0 : index
    %c0_41 = arith.constant 0 : index
    %c0_42 = arith.constant 0 : index
    %c0_43 = arith.constant 0 : index
    %57 = vector.load %arg6[%c0_40, %c0_41, %c0_42, %c0_43] : memref<1x1x16x128xf32, #tpu.memory_space<vmem>>, vector<1x1x16x128xf32>
    %58 = vector.shape_cast %57 : vector<1x1x16x128xf32> to vector<16x128xf32>
    %59 = vector.shape_cast %56 : vector<16x128xf32> to vector<1x1x16x128xf32>
    tpu.vector_store %arg6[%c0_40, %c0_41, %c0_42, %c0_43], %59 {strides = array<i32>} : memref<1x1x16x128xf32, #tpu.memory_space<vmem>>, vector<1x1x16x128xf32>,
    return
  }
  func.func @transform_0(%arg0: i32, %arg1: i32) -> (i32, i32, i32, i32) {
    %c0_i32 = arith.constant 0 : i32
    %0 = arith.addi %arg1, %c0_i32 : i32
    %c0_i32_0 = arith.constant 0 : i32
    %c0_i32_1 = arith.constant 0 : i32
    %c0_i32_2 = arith.constant 0 : i32
    return %arg0, %0, %c0_i32_0, %c0_i32_1 : i32, i32, i32, i32
  }
  func.func @transform_1(%arg0: i32, %arg1: i32) -> (i32, i32, i32, i32) {
    %c1_i32 = arith.constant 1 : i32
    %0 = arith.addi %arg1, %c1_i32 : i32
    %c0_i32 = arith.constant 0 : i32
    %c0_i32_0 = arith.constant 0 : i32
    %c0_i32_1 = arith.constant 0 : i32
    return %arg0, %0, %c0_i32, %c0_i32_0 : i32, i32, i32, i32
  }
  func.func @transform_2(%arg0: i32, %arg1: i32) -> (i32, i32, i32, i32) {
    %c2_i32 = arith.constant 2 : i32
    %0 = arith.addi %arg1, %c2_i32 : i32
    %c0_i32 = arith.constant 0 : i32
    %c0_i32_0 = arith.constant 0 : i32
    %c0_i32_1 = arith.constant 0 : i32
    return %arg0, %0, %c0_i32, %c0_i32_0 : i32, i32, i32, i32
  }
  func.func @transform_3(%arg0: i32, %arg1: i32) -> (i32, i32, i32) {
    %c0_i32 = arith.constant 0 : i32
    %c0_i32_0 = arith.constant 0 : i32
    %c0_i32_1 = arith.constant 0 : i32
    %c0_i32_2 = arith.constant 0 : i32
    return %c0_i32, %c0_i32_0, %c0_i32_1 : i32, i32, i32
  }
  func.func @transform_4(%arg0: i32, %arg1: i32) -> (i32, i32, i32, i32) {
    %c0_i32 = arith.constant 0 : i32
    %c0_i32_0 = arith.constant 0 : i32
    %c0_i32_1 = arith.constant 0 : i32
    return %arg0, %arg1, %c0_i32, %c0_i32_0 : i32, i32, i32, i32
  }
}

</mosaic_0001>

<llo_original>
// kernel: ipex_conv_add_relu.1
$region0: #{ipex_conv_add_relu.1}
  #allocation0 [shape = 'u32[]', space=smem, size = 0x4, offset = 0x4, fixed_abs, tag = 'smem constant byte address 0x4 - core index']
  #allocation1 [shape = 'u32[72,128]{1,0:T(1,128)}', space=vmem, size = 0x9000, scoped, tag = 'internal scratch']
  %s0 = inlined_call_operand.vmem [shape: f32[2,18,18,4], index: 0, kind: input, shape index: {}, may-alias: {0,1,2}]
  %s1 = inlined_call_operand.vmem [shape: f32[2,18,18,4], index: 1, kind: input, shape index: {}, may-alias: {0,1,2}]
  %s2 = inlined_call_operand.vmem [shape: f32[2,18,18,4], index: 2, kind: input, shape index: {}, may-alias: {0,1,2}]
  %s3 = inlined_call_operand.vmem [shape: f32[9,4,256], index: 3, kind: input, shape index: {}]
  %s4 = inlined_call_operand.vmem [shape: f32[2,16,16,128], index: 4, kind: output, shape index: {}]
  %s5 = sld [smem:[#allocation0]]
  $region49: #{ipex_conv_add_relu.1} parent=0
    _
  %s7 = ssub.s32 1, %s5
  %s8 = scalar_select 0, %s7, %s5
  loop: start=0, step=1, limit=34
  $region2: #{ipex_conv_add_relu.1} parent=0 // loop_pre_header
    _
  $region3: #{ipex_conv_add_relu.1} parent=0 // loop_header
    %s10 = sphi 0, %s14
    %p11 = scmp.ge.s32.totalorder %s10, 34
    %s17 = sphi 0, %s29
    %s18 = sphi 0, %s25
    %s19 = sphi 0, %s17
    %s20 = sphi 0, %s18
    %s21 = sphi 0, %s19
    %s22 = sphi 0, %s20
    %s34 = sphi 0, %s36
    %s37 = sphi 0, %s34
    %s38 = sphi 0, %s37
    %s54 = sphi 0, %s38
    %s64 = sphi 0, %s66
    %s67 = sphi 0, %s64
    %s68 = sphi 0, %s67
    %s84 = sphi 0, %s68
    %s94 = sphi 0, %s96
    %s97 = sphi 0, %s94
    %s98 = sphi 0, %s97
    %s114 = sphi 0, %s98
    %s118 = sphi 0, %s118
    %s120 = sphi 0, %s118
    %s121 = sphi 0, %s120
    %s135 = sphi 0, %s121
    %s143 = sphi 0, %s145
    %s146 = sphi 0, %s143
    %s147 = sphi 0, %s146
    %s163 = sphi 0, %s147
  $region4: #{ipex_conv_add_relu.1} parent=0 // loop_header_branch
    %13 = sbr.rel (%p11) target = $region8
  $region5: #{ipex_conv_add_relu.1} parent=0 // loop_body
    %s15 = ssub.s32 %s10, 1
    %s16 = ssub.s32 %s10, 2
    %s23 = sadd.s32 1, %s18
    %p24 = scmp.ge.s32.totalorder %s23, 16
    %s25 = scalar_select %p24, 0, %s23
    %s26 = sadd.s32 1, %s17
    %s27 = scalar_select %p24, %s26, %s17
    %p28 = scmp.ge.s32.totalorder %s27, 2
    %s29 = scalar_select %p28, 0, %s27
    %s30 = ssub.s32 %s17, %s29
    %s31 = ssub.s32 %s18, %s25
    %s32 = sor.u32 %s30, %s31
    %p33 = scmp.eq.s32.totalorder %s32, 0
    %s35 = sadd.s32 %s34, 1
    %s36 = scalar_select %p33, %s34, %s35
    %p39 = pneg %p33
    %p40 = scmp.eq.s32.totalorder %s10, 31
    %p41 = por %p39, %p40
    %p42 = scmp.ne.s32.totalorder %s34, %s37
    %p43 = scmp.eq.s32.totalorder %s10, 0
    %p44 = por %p42, %p43
    %p45 = scmp.ne.s32.totalorder %s34, %s37
    %p46 = scmp.eq.s32.totalorder %s15, 31
    %p47 = por %p45, %p46
    %p48 = scmp.ne.s32.totalorder %s37, %s38
    %p49 = scmp.eq.s32.totalorder %s15, 0
    %p50 = por %p48, %p49
    %p51 = scmp.ne.s32.totalorder %s37, %s38
    %p52 = scmp.eq.s32.totalorder %s16, 31
    %p53 = por %p51, %p52
    %p55 = scmp.ne.s32.totalorder %s38, %s54
    %p56 = scmp.eq.s32.totalorder %s16, 0
    %p57 = por %p55, %p56
    %s58 = sadd.s32 %s18, 1
    %s59 = sadd.s32 %s25, 1
    %s60 = ssub.s32 %s17, %s29
    %s61 = ssub.s32 %s58, %s59
    %s62 = sor.u32 %s60, %s61
    %p63 = scmp.eq.s32.totalorder %s62, 0
    %s65 = sadd.s32 %s64, 1
    %s66 = scalar_select %p63, %s64, %s65
    %p69 = pneg %p63
    %p70 = scmp.eq.s32.totalorder %s10, 31
    %p71 = por %p69, %p70
    %p72 = scmp.ne.s32.totalorder %s64, %s67
    %p73 = scmp.eq.s32.totalorder %s10, 0
    %p74 = por %p72, %p73
    %p75 = scmp.ne.s32.totalorder %s64, %s67
    %p76 = scmp.eq.s32.totalorder %s15, 31
    %p77 = por %p75, %p76
    %p78 = scmp.ne.s32.totalorder %s67, %s68
    %p79 = scmp.eq.s32.totalorder %s15, 0
    %p80 = por %p78, %p79
    %p81 = scmp.ne.s32.totalorder %s67, %s68
    %p82 = scmp.eq.s32.totalorder %s16, 31
    %p83 = por %p81, %p82
    %p85 = scmp.ne.s32.totalorder %s68, %s84
    %p86 = scmp.eq.s32.totalorder %s16, 0
    %p87 = por %p85, %p86
    %s88 = sadd.s32 %s18, 2
    %s89 = sadd.s32 %s25, 2
    %s90 = ssub.s32 %s17, %s29
    %s91 = ssub.s32 %s88, %s89
    %s92 = sor.u32 %s90, %s91
    %p93 = scmp.eq.s32.totalorder %s92, 0
    %s95 = sadd.s32 %s94, 1
    %s96 = scalar_select %p93, %s94, %s95
    %p99 = pneg %p93
    %p100 = scmp.eq.s32.totalorder %s10, 31
    %p101 = por %p99, %p100
    %p102 = scmp.ne.s32.totalorder %s94, %s97
    %p103 = scmp.eq.s32.totalorder %s10, 0
    %p104 = por %p102, %p103
    %p105 = scmp.ne.s32.totalorder %s94, %s97
    %p106 = scmp.eq.s32.totalorder %s15, 31
    %p107 = por %p105, %p106
    %p108 = scmp.ne.s32.totalorder %s97, %s98
    %p109 = scmp.eq.s32.totalorder %s15, 0
    %p110 = por %p108, %p109
    %p111 = scmp.ne.s32.totalorder %s97, %s98
    %p112 = scmp.eq.s32.totalorder %s16, 31
    %p113 = por %p111, %p112
    %p115 = scmp.ne.s32.totalorder %s98, %s114
    %p116 = scmp.eq.s32.totalorder %s16, 0
    %p117 = por %p115, %p116
    %s119 = sadd.s32 %s118, 1
    %p122 = scmp.eq.s32.totalorder %s10, 31
    %p123 = scmp.ne.s32.totalorder %s118, %s120
    %p124 = scmp.eq.s32.totalorder %s10, 0
    %p125 = por %p123, %p124
    %p126 = scmp.ne.s32.totalorder %s118, %s120
    %p127 = scmp.eq.s32.totalorder %s15, 31
    %p128 = por %p126, %p127
    %p129 = scmp.ne.s32.totalorder %s120, %s121
    %p130 = scmp.eq.s32.totalorder %s15, 0
    %p131 = por %p129, %p130
    %p132 = scmp.ne.s32.totalorder %s120, %s121
    %p133 = scmp.eq.s32.totalorder %s16, 31
    %p134 = por %p132, %p133
    %p136 = scmp.ne.s32.totalorder %s121, %s135
    %p137 = scmp.eq.s32.totalorder %s16, 0
    %p138 = por %p136, %p137
    %s139 = ssub.s32 %s17, %s29
    %s140 = ssub.s32 %s18, %s25
    %s141 = sor.u32 %s139, %s140
    %p142 = scmp.eq.s32.totalorder %s141, 0
    %s144 = sadd.s32 %s143, 1
    %s145 = scalar_select %p142, %s143, %s144
    %p148 = pneg %p142
    %p149 = scmp.eq.s32.totalorder %s10, 31
    %p150 = por %p148, %p149
    %p151 = scmp.ne.s32.totalorder %s143, %s146
    %p152 = scmp.eq.s32.totalorder %s10, 0
    %p153 = por %p151, %p152
    %p154 = scmp.ne.s32.totalorder %s143, %s146
    %p155 = scmp.eq.s32.totalorder %s15, 31
    %p156 = por %p154, %p155
    %p157 = scmp.ne.s32.totalorder %s146, %s147
    %p158 = scmp.eq.s32.totalorder %s15, 0
    %p159 = por %p157, %p158
    %p160 = scmp.ne.s32.totalorder %s146, %s147
    %p161 = scmp.eq.s32.totalorder %s16, 31
    %p162 = por %p160, %p161
    %p164 = scmp.ne.s32.totalorder %s147, %s163
    %p165 = scmp.eq.s32.totalorder %s16, 0
    %p166 = por %p164, %p165
    %p167 = scmp.le.s32.totalorder 1, %s10
    %p168 = scmp.lt.s32.totalorder %s10, 33
    %p169 = pnand %p167, %p168
    %p170 = pneg %p169
    // Predicated region
    $region9: #{ipex_conv_add_relu.1} parent=5 // pred_check
      _
    $region10: #{ipex_conv_add_relu.1} parent=5 // pred_check_branch
      %172 = sbr.rel (%p169) target = $region12
    $region11: #{ipex_conv_add_relu.1} parent=5 // pred_region
      %s173 = ssub.s32 %s10, 1
      // Predicated region
      $region13: #{ipex_conv_add_relu.1} parent=11 // pred_check
        %p174 = pneg %p131
      $region14: #{ipex_conv_add_relu.1} parent=11 // pred_check_branch
        %176 = sbr.rel (%p174) target = $region16
      $region15: #{ipex_conv_add_relu.1} parent=11 // pred_region
        _
      $region16: #{ipex_conv_add_relu.1} parent=11 // pred_fallthru
        _
    $region12: #{ipex_conv_add_relu.1} parent=5 // pred_fallthru
      _
    %p177 = scmp.lt.s32.totalorder %s10, 32
    // Predicated region
    $region17: #{ipex_conv_add_relu.1} parent=5 // pred_check
      %p178 = pneg %p177
    $region18: #{ipex_conv_add_relu.1} parent=5 // pred_check_branch
      %180 = sbr.rel (%p178) target = $region20
    $region19: #{ipex_conv_add_relu.1} parent=5 // pred_region
      // Predicated region
      $region21: #{ipex_conv_add_relu.1} parent=19 // pred_check
        %p181 = pneg %p44
      $region22: #{ipex_conv_add_relu.1} parent=19 // pred_check_branch
        %183 = sbr.rel (%p181) target = $region24
      $region23: #{ipex_conv_add_relu.1} parent=19 // pred_region
        %p184 = scmp.lt.s32.totalorder %s17, 1
        %s185 = scalar_select %p184, %s17, 1
        %p186 = scmp.lt.s32.totalorder %s18, 17
        %s187 = scalar_select %p186, %s18, 17
        %s188 = smul.addr %s187, 3
        %s189 = smul.addr %s185, 54
        %s190 = sadd.s32 %s188, %s189
        %s191 = smul.addr %s190, 8
        %s192 = scalar_lea.vmem %s0, %s191
      $region24: #{ipex_conv_add_relu.1} parent=19 // pred_fallthru
        _
      // Predicated region
      $region25: #{ipex_conv_add_relu.1} parent=19 // pred_check
        %p193 = pneg %p74
      $region26: #{ipex_conv_add_relu.1} parent=19 // pred_check_branch
        %195 = sbr.rel (%p193) target = $region28
      $region27: #{ipex_conv_add_relu.1} parent=19 // pred_region
        %s196 = sadd.s32 %s18, 1
        %p197 = scmp.lt.s32.totalorder %s17, 1
        %s198 = scalar_select %p197, %s17, 1
        %p199 = scmp.lt.s32.totalorder %s196, 17
        %s200 = scalar_select %p199, %s196, 17
        %s201 = smul.addr %s200, 3
        %s202 = smul.addr %s198, 54
        %s203 = sadd.s32 %s201, %s202
        %s204 = smul.addr %s203, 8
        %s205 = scalar_lea.vmem %s1, %s204
        %s206 = sadd.s32 %s18, 1
      $region28: #{ipex_conv_add_relu.1} parent=19 // pred_fallthru
        _
      // Predicated region
      $region29: #{ipex_conv_add_relu.1} parent=19 // pred_check
        %p207 = pneg %p104
      $region30: #{ipex_conv_add_relu.1} parent=19 // pred_check_branch
        %209 = sbr.rel (%p207) target = $region32
      $region31: #{ipex_conv_add_relu.1} parent=19 // pred_region
        %s210 = sadd.s32 %s18, 2
        %p211 = scmp.lt.s32.totalorder %s17, 1
        %s212 = scalar_select %p211, %s17, 1
        %p213 = scmp.lt.s32.totalorder %s210, 17
        %s214 = scalar_select %p213, %s210, 17
        %s215 = smul.addr %s214, 3
        %s216 = smul.addr %s212, 54
        %s217 = sadd.s32 %s215, %s216
        %s218 = smul.addr %s217, 8
        %s219 = scalar_lea.vmem %s2, %s218
        %s220 = sadd.s32 %s18, 2
      $region32: #{ipex_conv_add_relu.1} parent=19 // pred_fallthru
        _
    $region20: #{ipex_conv_add_relu.1} parent=5 // pred_fallthru
      _
    %p221 = scmp.le.s32.totalorder 1, %s10
    %p222 = scmp.lt.s32.totalorder %s10, 33
    %p223 = pnand %p221, %p222
    %p224 = pneg %p223
    // Predicated region
    $region33: #{ipex_conv_add_relu.1} parent=5 // pred_check
      _
    $region34: #{ipex_conv_add_relu.1} parent=5 // pred_check_branch
      %226 = sbr.rel (%p223) target = $region36
    $region35: #{ipex_conv_add_relu.1} parent=5 // pred_region
      %s227 = ssub.s32 %s10, 1
      %p228 = scmp.lt.s32.totalorder %s19, 1
      %s229 = scalar_select %p228, %s19, 1
      %p230 = scmp.lt.s32.totalorder %s20, 17
      %s231 = scalar_select %p230, %s20, 17
      %s232 = smul.addr %s231, 3
      %s233 = smul.addr %s229, 54
      %s234 = sadd.s32 %s232, %s233
      %s235 = smul.addr %s234, 8
      %s236 = scalar_lea.vmem %s0, %s235
      %p237 = pneg %p50
      %p238 = pneg %p47
      %s239 = sadd.s32 %s20, 1
      %p240 = scmp.lt.s32.totalorder %s19, 1
      %s241 = scalar_select %p240, %s19, 1
      %p242 = scmp.lt.s32.totalorder %s239, 17
      %s243 = scalar_select %p242, %s239, 17
      %s244 = smul.addr %s243, 3
      %s245 = smul.addr %s241, 54
      %s246 = sadd.s32 %s244, %s245
      %s247 = smul.addr %s246, 8
      %s248 = scalar_lea.vmem %s1, %s247
      %p249 = pneg %p80
      %p250 = pneg %p77
      %s251 = sadd.s32 %s20, 2
      %p252 = scmp.lt.s32.totalorder %s19, 1
      %s253 = scalar_select %p252, %s19, 1
      %p254 = scmp.lt.s32.totalorder %s251, 17
      %s255 = scalar_select %p254, %s251, 17
      %s256 = smul.addr %s255, 3
      %s257 = smul.addr %s253, 54
      %s258 = sadd.s32 %s256, %s257
      %s259 = smul.addr %s258, 8
      %s260 = scalar_lea.vmem %s2, %s259
      %p261 = pneg %p110
      %p262 = pneg %p107
      %p263 = pneg %p131
      %p264 = pneg %p128
      %p265 = pneg %p159
      %p266 = pneg %p156
      %p267 = scmp.lt.s32.totalorder %s19, 1
      %s268 = scalar_select %p267, %s19, 1
      %p269 = scmp.lt.s32.totalorder %s20, 15
      %s270 = scalar_select %p269, %s20, 15
      %s271 = smul.addr %s270, 2
      %s272 = smul.addr %s268, 32
      %s273 = sadd.s32 %s271, %s272
      %s274 = smul.addr %s273, 8
      %s275 = scalar_lea.vmem %s4, %s274
      %p276 = scmp.lt.s32.totalorder %s19, 1
      %s277 = scalar_select %p276, %s19, 1
      %p278 = scmp.lt.s32.totalorder %s20, 17
      %s279 = scalar_select %p278, %s20, 17
      %s280 = smul.addr %s279, 3
      %s281 = smul.addr %s277, 54
      %s282 = sadd.s32 %s280, %s281
      %s283 = smul.addr %s282, 8
      %s284 = scalar_lea.vmem %s0, %s283
      %s285 = sadd.s32 %s20, 1
      %p286 = scmp.lt.s32.totalorder %s19, 1
      %s287 = scalar_select %p286, %s19, 1
      %p288 = scmp.lt.s32.totalorder %s285, 17
      %s289 = scalar_select %p288, %s285, 17
      %s290 = smul.addr %s289, 3
      %s291 = smul.addr %s287, 54
      %s292 = sadd.s32 %s290, %s291
      %s293 = smul.addr %s292, 8
      %s294 = scalar_lea.vmem %s1, %s293
      %s295 = sadd.s32 %s20, 1
      %s296 = sadd.s32 %s20, 2
      %p297 = scmp.lt.s32.totalorder %s19, 1
      %s298 = scalar_select %p297, %s19, 1
      %p299 = scmp.lt.s32.totalorder %s296, 17
      %s300 = scalar_select %p299, %s296, 17
      %s301 = smul.addr %s300, 3
      %s302 = smul.addr %s298, 54
      %s303 = sadd.s32 %s301, %s302
      %s304 = smul.addr %s303, 8
      %s305 = scalar_lea.vmem %s2, %s304
      %s306 = sadd.s32 %s20, 2
      %p307 = scmp.lt.s32.totalorder %s19, 1
      %s308 = scalar_select %p307, %s19, 1
      %p309 = scmp.lt.s32.totalorder %s20, 15
      %s310 = scalar_select %p309, %s20, 15
      %s311 = smul.addr %s310, 2
      %s312 = smul.addr %s308, 32
      %s313 = sadd.s32 %s311, %s312
      %s314 = smul.addr %s313, 8
      %s315 = scalar_lea.vmem %s4, %s314
      %v316 = vld [vmem:[%s284] sm:$0xff]
      %v317 = vld [vmem:[%s284 + $0x8] sm:$0xff]
      %v318 = vld [vmem:[%s284 + $0x10] sm:$0x3]
      %v319 = vld [vmem:[%s3] sm:$0xff]
      %s320 = scalar_lea.vmem %s3, 8
      %v321 = vld [vmem:[%s320] sm:$0xff]
      %vm325 = vcmask 1046528
      %v326 = vrot.slane %v316, 1
      %v327 = vrot.slane %v317, 1
      %v328 = vsel %vm325, %v326, %v327
      %v329 = vrot.slane %v318, 1
      %v330 = vsel %vm325, %v327, %v329
      %332 = vst [vmem:[#allocation1] ss:$2 sm:$0xff] %v321
      %v333 = vld.sshfl [vmem:[#allocation1] sm:$0xff pattern:$0x75316420]
      %v334 = vld.sshfl [vmem:[#allocation1 + $0x8] sm:$0xff pattern:$0x75316420]
      %vm335 = vcmask 31744
      %v336 = vsel %vm335, %v328, 0
      %v338 = vsel %vm335, %v330, 0
      %vm340 = vcmask 1043456
      %v341 = vsel %vm340, %v333, 0
      %v343 = vsel %vm340, %v334, 0
      %345 = vmatpush.msra.mxu0 0.0
      %346 = vmatpush.msra.mxu0 0.0
      %347 = vmatpush.msra.mxu0 0.0
      %348 = vmatpush.msra.mxu0 0.0
      %349 = vmatpush.msra.mxu0 0.0
      %350 = vmatpush.msra.mxu0 0.0
      %351 = vmatpush.msra.mxu0 0.0
      %352 = vmatpush.msra.mxu0 0.0
      %353 = vmatpush.msra.mxu0 0.0
      %354 = vmatpush.msra.mxu0 0.0
      %355 = vmatpush.msra.mxu0 0.0
      %356 = vmatpush.msra.mxu0 0.0
      %357 = vmatpush.msra.mxu0 0.0
      %358 = vmatpush.msra.mxu0 0.0
      %359 = vmatpush.msra.mxu0 0.0
      %360 = vmatpush.msra.mxu0 %v341
      %361 = vmatmul.f32.gmra.mxu0 %v336
      %v362 = vpop.f32.mrf.mxu0
      %v363 = vadd.f32 0.0, %v362
      %364 = vmatmul.f32.gmra.mxu0 %v338
      %v365 = vpop.f32.mrf.mxu0
      %v366 = vadd.f32 0.0, %v365
      %367 = vdwg.mxu0
      %368 = vmatpush.msra.mxu0 0.0
      %369 = vmatpush.msra.mxu0 0.0
      %370 = vmatpush.msra.mxu0 0.0
      %371 = vmatpush.msra.mxu0 0.0
      %372 = vmatpush.msra.mxu0 0.0
      %373 = vmatpush.msra.mxu0 0.0
      %374 = vmatpush.msra.mxu0 0.0
      %375 = vmatpush.msra.mxu0 0.0
      %376 = vmatpush.msra.mxu0 0.0
      %377 = vmatpush.msra.mxu0 0.0
      %378 = vmatpush.msra.mxu0 0.0
      %379 = vmatpush.msra.mxu0 0.0
      %380 = vmatpush.msra.mxu0 0.0
      %381 = vmatpush.msra.mxu0 0.0
      %382 = vmatpush.msra.mxu0 0.0
      %383 = vmatpush.msra.mxu0 %v343
      %384 = vmatmul.f32.gmra.mxu0 %v336
      %v385 = vpop.f32.mrf.mxu0
      %v386 = vadd.f32 0.0, %v385
      %387 = vmatmul.f32.gmra.mxu0 %v338
      %v388 = vpop.f32.mrf.mxu0
      %v389 = vadd.f32 0.0, %v388
      %390 = vdwg.mxu0
      %392 = vst [vmem:[#allocation1] ss:$2 sm:$0xff] %v319
      %v393 = vld.sshfl [vmem:[#allocation1] sm:$0xff pattern:$0x75316420]
      %v394 = vld.sshfl [vmem:[#allocation1 + $0x8] sm:$0xff pattern:$0x75316420]
      %v395 = vsel %vm335, %v316, 0
      %v397 = vsel %vm335, %v317, 0
      %v399 = vsel %vm340, %v393, 0
      %v401 = vsel %vm340, %v394, 0
      %403 = vmatpush.msra.mxu0 0.0
      %404 = vmatpush.msra.mxu0 0.0
      %405 = vmatpush.msra.mxu0 0.0
      %406 = vmatpush.msra.mxu0 0.0
      %407 = vmatpush.msra.mxu0 0.0
      %408 = vmatpush.msra.mxu0 0.0
      %409 = vmatpush.msra.mxu0 0.0
      %410 = vmatpush.msra.mxu0 0.0
      %411 = vmatpush.msra.mxu0 0.0
      %412 = vmatpush.msra.mxu0 0.0
      %413 = vmatpush.msra.mxu0 0.0
      %414 = vmatpush.msra.mxu0 0.0
      %415 = vmatpush.msra.mxu0 0.0
      %416 = vmatpush.msra.mxu0 0.0
      %417 = vmatpush.msra.mxu0 0.0
      %418 = vmatpush.msra.mxu0 %v399
      %419 = vmatmul.f32.gmra.mxu0 %v395
      %v420 = vpop.f32.mrf.mxu0
      %v421 = vadd.f32 %v363, %v420
      %422 = vmatmul.f32.gmra.mxu0 %v397
      %v423 = vpop.f32.mrf.mxu0
      %v424 = vadd.f32 %v366, %v423
      %425 = vdwg.mxu0
      %426 = vmatpush.msra.mxu0 0.0
      %427 = vmatpush.msra.mxu0 0.0
      %428 = vmatpush.msra.mxu0 0.0
      %429 = vmatpush.msra.mxu0 0.0
      %430 = vmatpush.msra.mxu0 0.0
      %431 = vmatpush.msra.mxu0 0.0
      %432 = vmatpush.msra.mxu0 0.0
      %433 = vmatpush.msra.mxu0 0.0
      %434 = vmatpush.msra.mxu0 0.0
      %435 = vmatpush.msra.mxu0 0.0
      %436 = vmatpush.msra.mxu0 0.0
      %437 = vmatpush.msra.mxu0 0.0
      %438 = vmatpush.msra.mxu0 0.0
      %439 = vmatpush.msra.mxu0 0.0
      %440 = vmatpush.msra.mxu0 0.0
      %441 = vmatpush.msra.mxu0 %v401
      %442 = vmatmul.f32.gmra.mxu0 %v395
      %v443 = vpop.f32.mrf.mxu0
      %v444 = vadd.f32 %v386, %v443
      %445 = vmatmul.f32.gmra.mxu0 %v397
      %v446 = vpop.f32.mrf.mxu0
      %v447 = vadd.f32 %v389, %v446
      %448 = vdwg.mxu0
      %s449 = scalar_lea.vmem %s3, 16
      %v450 = vld [vmem:[%s449] sm:$0xff]
      %vm451 = vcmask 1045504
      %v452 = vrot.slane %v316, 2
      %v453 = vrot.slane %v317, 2
      %v454 = vsel %vm451, %v452, %v453
      %v455 = vrot.slane %v318, 2
      %v456 = vsel %vm451, %v453, %v455
      %458 = vst [vmem:[#allocation1] ss:$2 sm:$0xff] %v450
      %v459 = vld.sshfl [vmem:[#allocation1] sm:$0xff pattern:$0x75316420]
      %v460 = vld.sshfl [vmem:[#allocation1 + $0x8] sm:$0xff pattern:$0x75316420]
      %v461 = vsel %vm335, %v454, 0
      %v463 = vsel %vm335, %v456, 0
      %v465 = vsel %vm340, %v459, 0
      %v467 = vsel %vm340, %v460, 0
      %469 = vmatpush.msra.mxu0 0.0
      %470 = vmatpush.msra.mxu0 0.0
      %471 = vmatpush.msra.mxu0 0.0
      %472 = vmatpush.msra.mxu0 0.0
      %473 = vmatpush.msra.mxu0 0.0
      %474 = vmatpush.msra.mxu0 0.0
      %475 = vmatpush.msra.mxu0 0.0
      %476 = vmatpush.msra.mxu0 0.0
      %477 = vmatpush.msra.mxu0 0.0
      %478 = vmatpush.msra.mxu0 0.0
      %479 = vmatpush.msra.mxu0 0.0
      %480 = vmatpush.msra.mxu0 0.0
      %481 = vmatpush.msra.mxu0 0.0
      %482 = vmatpush.msra.mxu0 0.0
      %483 = vmatpush.msra.mxu0 0.0
      %484 = vmatpush.msra.mxu0 %v465
      %485 = vmatmul.f32.gmra.mxu0 %v461
      %v486 = vpop.f32.mrf.mxu0
      %v487 = vadd.f32 0.0, %v486
      %488 = vmatmul.f32.gmra.mxu0 %v463
      %v489 = vpop.f32.mrf.mxu0
      %v490 = vadd.f32 0.0, %v489
      %491 = vdwg.mxu0
      %492 = vmatpush.msra.mxu0 0.0
      %493 = vmatpush.msra.mxu0 0.0
      %494 = vmatpush.msra.mxu0 0.0
      %495 = vmatpush.msra.mxu0 0.0
      %496 = vmatpush.msra.mxu0 0.0
      %497 = vmatpush.msra.mxu0 0.0
      %498 = vmatpush.msra.mxu0 0.0
      %499 = vmatpush.msra.mxu0 0.0
      %500 = vmatpush.msra.mxu0 0.0
      %501 = vmatpush.msra.mxu0 0.0
      %502 = vmatpush.msra.mxu0 0.0
      %503 = vmatpush.msra.mxu0 0.0
      %504 = vmatpush.msra.mxu0 0.0
      %505 = vmatpush.msra.mxu0 0.0
      %506 = vmatpush.msra.mxu0 0.0
      %507 = vmatpush.msra.mxu0 %v467
      %508 = vmatmul.f32.gmra.mxu0 %v461
      %v509 = vpop.f32.mrf.mxu0
      %v510 = vadd.f32 0.0, %v509
      %511 = vmatmul.f32.gmra.mxu0 %v463
      %v512 = vpop.f32.mrf.mxu0
      %v513 = vadd.f32 0.0, %v512
      %514 = vdwg.mxu0
      %v515 = vadd.f32 %v421, %v487
      %v516 = vadd.f32 %v444, %v510
      %v517 = vadd.f32 %v424, %v490
      %v518 = vadd.f32 %v447, %v513
      %v519 = vld [vmem:[%s294] sm:$0xff]
      %v520 = vld [vmem:[%s294 + $0x8] sm:$0xff]
      %v521 = vld [vmem:[%s294 + $0x10] sm:$0x3]
      %s522 = scalar_lea.vmem %s3, 24
      %v523 = vld [vmem:[%s522] sm:$0xff]
      %525 = vst [vmem:[#allocation1] ss:$2 sm:$0xff] %v523
      %v526 = vld.sshfl [vmem:[#allocation1] sm:$0xff pattern:$0x75316420]
      %v527 = vld.sshfl [vmem:[#allocation1 + $0x8] sm:$0xff pattern:$0x75316420]
      %v529 = vsel %vm335, %v519, 0
      %v532 = vsel %vm335, %v520, 0
      %v534 = vsel %vm340, %v526, 0
      %v536 = vsel %vm340, %v527, 0
      %538 = vmatpush.msra.mxu0 0.0
      %539 = vmatpush.msra.mxu0 0.0
      %540 = vmatpush.msra.mxu0 0.0
      %541 = vmatpush.msra.mxu0 0.0
      %542 = vmatpush.msra.mxu0 0.0
      %543 = vmatpush.msra.mxu0 0.0
      %544 = vmatpush.msra.mxu0 0.0
      %545 = vmatpush.msra.mxu0 0.0
      %546 = vmatpush.msra.mxu0 0.0
      %547 = vmatpush.msra.mxu0 0.0
      %548 = vmatpush.msra.mxu0 0.0
      %549 = vmatpush.msra.mxu0 0.0
      %550 = vmatpush.msra.mxu0 0.0
      %551 = vmatpush.msra.mxu0 0.0
      %552 = vmatpush.msra.mxu0 0.0
      %553 = vmatpush.msra.mxu0 %v534
      %554 = vmatmul.f32.gmra.mxu0 %v529
      %v555 = vpop.f32.mrf.mxu0
      %v556 = vadd.f32 0.0, %v555
      %557 = vmatmul.f32.gmra.mxu0 %v532
      %v558 = vpop.f32.mrf.mxu0
      %v559 = vadd.f32 0.0, %v558
      %560 = vdwg.mxu0
      %561 = vmatpush.msra.mxu0 0.0
      %562 = vmatpush.msra.mxu0 0.0
      %563 = vmatpush.msra.mxu0 0.0
      %564 = vmatpush.msra.mxu0 0.0
      %565 = vmatpush.msra.mxu0 0.0
      %566 = vmatpush.msra.mxu0 0.0
      %567 = vmatpush.msra.mxu0 0.0
      %568 = vmatpush.msra.mxu0 0.0
      %569 = vmatpush.msra.mxu0 0.0
      %570 = vmatpush.msra.mxu0 0.0
      %571 = vmatpush.msra.mxu0 0.0
      %572 = vmatpush.msra.mxu0 0.0
      %573 = vmatpush.msra.mxu0 0.0
      %574 = vmatpush.msra.mxu0 0.0
      %575 = vmatpush.msra.mxu0 0.0
      %576 = vmatpush.msra.mxu0 %v536
      %577 = vmatmul.f32.gmra.mxu0 %v529
      %v578 = vpop.f32.mrf.mxu0
      %v579 = vadd.f32 0.0, %v578
      %580 = vmatmul.f32.gmra.mxu0 %v532
      %v581 = vpop.f32.mrf.mxu0
      %v582 = vadd.f32 0.0, %v581
      %583 = vdwg.mxu0
      %v584 = vadd.f32 %v515, %v556
      %v585 = vadd.f32 %v516, %v579
      %v586 = vadd.f32 %v517, %v559
      %v587 = vadd.f32 %v518, %v582
      %s588 = scalar_lea.vmem %s3, 32
      %v589 = vld [vmem:[%s588] sm:$0xff]
      %v591 = vrot.slane %v519, 1
      %v592 = vrot.slane %v520, 1
      %v593 = vsel %vm325, %v591, %v592
      %v594 = vrot.slane %v521, 1
      %v595 = vsel %vm325, %v592, %v594
      %597 = vst [vmem:[#allocation1] ss:$2 sm:$0xff] %v589
      %v598 = vld.sshfl [vmem:[#allocation1] sm:$0xff pattern:$0x75316420]
      %v599 = vld.sshfl [vmem:[#allocation1 + $0x8] sm:$0xff pattern:$0x75316420]
      %v600 = vsel %vm335, %v593, 0
      %v602 = vsel %vm335, %v595, 0
      %v604 = vsel %vm340, %v598, 0
      %v606 = vsel %vm340, %v599, 0
      %608 = vmatpush.msra.mxu0 0.0
      %609 = vmatpush.msra.mxu0 0.0
      %610 = vmatpush.msra.mxu0 0.0
      %611 = vmatpush.msra.mxu0 0.0
      %612 = vmatpush.msra.mxu0 0.0
      %613 = vmatpush.msra.mxu0 0.0
      %614 = vmatpush.msra.mxu0 0.0
      %615 = vmatpush.msra.mxu0 0.0
      %616 = vmatpush.msra.mxu0 0.0
      %617 = vmatpush.msra.mxu0 0.0
      %618 = vmatpush.msra.mxu0 0.0
      %619 = vmatpush.msra.mxu0 0.0
      %620 = vmatpush.msra.mxu0 0.0
      %621 = vmatpush.msra.mxu0 0.0
      %622 = vmatpush.msra.mxu0 0.0
      %623 = vmatpush.msra.mxu0 %v604
      %624 = vmatmul.f32.gmra.mxu0 %v600
      %v625 = vpop.f32.mrf.mxu0
      %v626 = vadd.f32 0.0, %v625
      %627 = vmatmul.f32.gmra.mxu0 %v602
      %v628 = vpop.f32.mrf.mxu0
      %v629 = vadd.f32 0.0, %v628
      %630 = vdwg.mxu0
      %631 = vmatpush.msra.mxu0 0.0
      %632 = vmatpush.msra.mxu0 0.0
      %633 = vmatpush.msra.mxu0 0.0
      %634 = vmatpush.msra.mxu0 0.0
      %635 = vmatpush.msra.mxu0 0.0
      %636 = vmatpush.msra.mxu0 0.0
      %637 = vmatpush.msra.mxu0 0.0
      %638 = vmatpush.msra.mxu0 0.0
      %639 = vmatpush.msra.mxu0 0.0
      %640 = vmatpush.msra.mxu0 0.0
      %641 = vmatpush.msra.mxu0 0.0
      %642 = vmatpush.msra.mxu0 0.0
      %643 = vmatpush.msra.mxu0 0.0
      %644 = vmatpush.msra.mxu0 0.0
      %645 = vmatpush.msra.mxu0 0.0
      %646 = vmatpush.msra.mxu0 %v606
      %647 = vmatmul.f32.gmra.mxu0 %v600
      %v648 = vpop.f32.mrf.mxu0
      %v649 = vadd.f32 0.0, %v648
      %650 = vmatmul.f32.gmra.mxu0 %v602
      %v651 = vpop.f32.mrf.mxu0
      %v652 = vadd.f32 0.0, %v651
      %653 = vdwg.mxu0
      %v654 = vadd.f32 %v584, %v626
      %v655 = vadd.f32 %v585, %v649
      %v656 = vadd.f32 %v586, %v629
      %v657 = vadd.f32 %v587, %v652
      %s658 = scalar_lea.vmem %s3, 40
      %v659 = vld [vmem:[%s658] sm:$0xff]
      %v660 = vrot.slane %v519, 2
      %v661 = vrot.slane %v520, 2
      %v662 = vsel %vm451, %v660, %v661
      %v663 = vrot.slane %v521, 2
      %v664 = vsel %vm451, %v661, %v663
      %666 = vst [vmem:[#allocation1] ss:$2 sm:$0xff] %v659
      %v667 = vld.sshfl [vmem:[#allocation1] sm:$0xff pattern:$0x75316420]
      %v668 = vld.sshfl [vmem:[#allocation1 + $0x8] sm:$0xff pattern:$0x75316420]
      %v669 = vsel %vm335, %v662, 0
      %v671 = vsel %vm335, %v664, 0
      %v673 = vsel %vm340, %v667, 0
      %v675 = vsel %vm340, %v668, 0
      %677 = vmatpush.msra.mxu0 0.0
      %678 = vmatpush.msra.mxu0 0.0
      %679 = vmatpush.msra.mxu0 0.0
      %680 = vmatpush.msra.mxu0 0.0
      %681 = vmatpush.msra.mxu0 0.0
      %682 = vmatpush.msra.mxu0 0.0
      %683 = vmatpush.msra.mxu0 0.0
      %684 = vmatpush.msra.mxu0 0.0
      %685 = vmatpush.msra.mxu0 0.0
      %686 = vmatpush.msra.mxu0 0.0
      %687 = vmatpush.msra.mxu0 0.0
      %688 = vmatpush.msra.mxu0 0.0
      %689 = vmatpush.msra.mxu0 0.0
      %690 = vmatpush.msra.mxu0 0.0
      %691 = vmatpush.msra.mxu0 0.0
      %692 = vmatpush.msra.mxu0 %v673
      %693 = vmatmul.f32.gmra.mxu0 %v669
      %v694 = vpop.f32.mrf.mxu0
      %v695 = vadd.f32 0.0, %v694
      %696 = vmatmul.f32.gmra.mxu0 %v671
      %v697 = vpop.f32.mrf.mxu0
      %v698 = vadd.f32 0.0, %v697
      %699 = vdwg.mxu0
      %700 = vmatpush.msra.mxu0 0.0
      %701 = vmatpush.msra.mxu0 0.0
      %702 = vmatpush.msra.mxu0 0.0
      %703 = vmatpush.msra.mxu0 0.0
      %704 = vmatpush.msra.mxu0 0.0
      %705 = vmatpush.msra.mxu0 0.0
      %706 = vmatpush.msra.mxu0 0.0
      %707 = vmatpush.msra.mxu0 0.0
      %708 = vmatpush.msra.mxu0 0.0
      %709 = vmatpush.msra.mxu0 0.0
      %710 = vmatpush.msra.mxu0 0.0
      %711 = vmatpush.msra.mxu0 0.0
      %712 = vmatpush.msra.mxu0 0.0
      %713 = vmatpush.msra.mxu0 0.0
      %714 = vmatpush.msra.mxu0 0.0
      %715 = vmatpush.msra.mxu0 %v675
      %716 = vmatmul.f32.gmra.mxu0 %v669
      %v717 = vpop.f32.mrf.mxu0
      %v718 = vadd.f32 0.0, %v717
      %719 = vmatmul.f32.gmra.mxu0 %v671
      %v720 = vpop.f32.mrf.mxu0
      %v721 = vadd.f32 0.0, %v720
      %722 = vdwg.mxu0
      %v723 = vadd.f32 %v654, %v695
      %v724 = vadd.f32 %v655, %v718
      %v725 = vadd.f32 %v656, %v698
      %v726 = vadd.f32 %v657, %v721
      %v727 = vld [vmem:[%s305] sm:$0xff]
      %v728 = vld [vmem:[%s305 + $0x8] sm:$0xff]
      %v729 = vld [vmem:[%s305 + $0x10] sm:$0x3]
      %s730 = scalar_lea.vmem %s3, 48
      %v731 = vld [vmem:[%s730] sm:$0xff]
      %733 = vst [vmem:[#allocation1] ss:$2 sm:$0xff] %v731
      %v734 = vld.sshfl [vmem:[#allocation1] sm:$0xff pattern:$0x75316420]
      %v735 = vld.sshfl [vmem:[#allocation1 + $0x8] sm:$0xff pattern:$0x75316420]
      %v737 = vsel %vm335, %v727, 0
      %v740 = vsel %vm335, %v728, 0
      %v742 = vsel %vm340, %v734, 0
      %v744 = vsel %vm340, %v735, 0
      %746 = vmatpush.msra.mxu0 0.0
      %747 = vmatpush.msra.mxu0 0.0
      %748 = vmatpush.msra.mxu0 0.0
      %749 = vmatpush.msra.mxu0 0.0
      %750 = vmatpush.msra.mxu0 0.0
      %751 = vmatpush.msra.mxu0 0.0
      %752 = vmatpush.msra.mxu0 0.0
      %753 = vmatpush.msra.mxu0 0.0
      %754 = vmatpush.msra.mxu0 0.0
      %755 = vmatpush.msra.mxu0 0.0
      %756 = vmatpush.msra.mxu0 0.0
      %757 = vmatpush.msra.mxu0 0.0
      %758 = vmatpush.msra.mxu0 0.0
      %759 = vmatpush.msra.mxu0 0.0
      %760 = vmatpush.msra.mxu0 0.0
      %761 = vmatpush.msra.mxu0 %v742
      %762 = vmatmul.f32.gmra.mxu0 %v737
      %v763 = vpop.f32.mrf.mxu0
      %v764 = vadd.f32 0.0, %v763
      %765 = vmatmul.f32.gmra.mxu0 %v740
      %v766 = vpop.f32.mrf.mxu0
      %v767 = vadd.f32 0.0, %v766
      %768 = vdwg.mxu0
      %769 = vmatpush.msra.mxu0 0.0
      %770 = vmatpush.msra.mxu0 0.0
      %771 = vmatpush.msra.mxu0 0.0
      %772 = vmatpush.msra.mxu0 0.0
      %773 = vmatpush.msra.mxu0 0.0
      %774 = vmatpush.msra.mxu0 0.0
      %775 = vmatpush.msra.mxu0 0.0
      %776 = vmatpush.msra.mxu0 0.0
      %777 = vmatpush.msra.mxu0 0.0
      %778 = vmatpush.msra.mxu0 0.0
      %779 = vmatpush.msra.mxu0 0.0
      %780 = vmatpush.msra.mxu0 0.0
      %781 = vmatpush.msra.mxu0 0.0
      %782 = vmatpush.msra.mxu0 0.0
      %783 = vmatpush.msra.mxu0 0.0
      %784 = vmatpush.msra.mxu0 %v744
      %785 = vmatmul.f32.gmra.mxu0 %v737
      %v786 = vpop.f32.mrf.mxu0
      %v787 = vadd.f32 0.0, %v786
      %788 = vmatmul.f32.gmra.mxu0 %v740
      %v789 = vpop.f32.mrf.mxu0
      %v790 = vadd.f32 0.0, %v789
      %791 = vdwg.mxu0
      %v792 = vadd.f32 %v723, %v764
      %v793 = vadd.f32 %v724, %v787
      %v794 = vadd.f32 %v725, %v767
      %v795 = vadd.f32 %v726, %v790
      %s796 = scalar_lea.vmem %s3, 56
      %v797 = vld [vmem:[%s796] sm:$0xff]
      %v799 = vrot.slane %v727, 1
      %v800 = vrot.slane %v728, 1
      %v801 = vsel %vm325, %v799, %v800
      %v802 = vrot.slane %v729, 1
      %v803 = vsel %vm325, %v800, %v802
      %805 = vst [vmem:[#allocation1] ss:$2 sm:$0xff] %v797
      %v806 = vld.sshfl [vmem:[#allocation1] sm:$0xff pattern:$0x75316420]
      %v807 = vld.sshfl [vmem:[#allocation1 + $0x8] sm:$0xff pattern:$0x75316420]
      %v808 = vsel %vm335, %v801, 0
      %v810 = vsel %vm335, %v803, 0
      %v812 = vsel %vm340, %v806, 0
      %v814 = vsel %vm340, %v807, 0
      %816 = vmatpush.msra.mxu0 0.0
      %817 = vmatpush.msra.mxu0 0.0
      %818 = vmatpush.msra.mxu0 0.0
      %819 = vmatpush.msra.mxu0 0.0
      %820 = vmatpush.msra.mxu0 0.0
      %821 = vmatpush.msra.mxu0 0.0
      %822 = vmatpush.msra.mxu0 0.0
      %823 = vmatpush.msra.mxu0 0.0
      %824 = vmatpush.msra.mxu0 0.0
      %825 = vmatpush.msra.mxu0 0.0
      %826 = vmatpush.msra.mxu0 0.0
      %827 = vmatpush.msra.mxu0 0.0
      %828 = vmatpush.msra.mxu0 0.0
      %829 = vmatpush.msra.mxu0 0.0
      %830 = vmatpush.msra.mxu0 0.0
      %831 = vmatpush.msra.mxu0 %v812
      %832 = vmatmul.f32.gmra.mxu0 %v808
      %v833 = vpop.f32.mrf.mxu0
      %v834 = vadd.f32 0.0, %v833
      %835 = vmatmul.f32.gmra.mxu0 %v810
      %v836 = vpop.f32.mrf.mxu0
      %v837 = vadd.f32 0.0, %v836
      %838 = vdwg.mxu0
      %839 = vmatpush.msra.mxu0 0.0
      %840 = vmatpush.msra.mxu0 0.0
      %841 = vmatpush.msra.mxu0 0.0
      %842 = vmatpush.msra.mxu0 0.0
      %843 = vmatpush.msra.mxu0 0.0
      %844 = vmatpush.msra.mxu0 0.0
      %845 = vmatpush.msra.mxu0 0.0
      %846 = vmatpush.msra.mxu0 0.0
      %847 = vmatpush.msra.mxu0 0.0
      %848 = vmatpush.msra.mxu0 0.0
      %849 = vmatpush.msra.mxu0 0.0
      %850 = vmatpush.msra.mxu0 0.0
      %851 = vmatpush.msra.mxu0 0.0
      %852 = vmatpush.msra.mxu0 0.0
      %853 = vmatpush.msra.mxu0 0.0
      %854 = vmatpush.msra.mxu0 %v814
      %855 = vmatmul.f32.gmra.mxu0 %v808
      %v856 = vpop.f32.mrf.mxu0
      %v857 = vadd.f32 0.0, %v856
      %858 = vmatmul.f32.gmra.mxu0 %v810
      %v859 = vpop.f32.mrf.mxu0
      %v860 = vadd.f32 0.0, %v859
      %861 = vdwg.mxu0
      %v862 = vadd.f32 %v792, %v834
      %v863 = vadd.f32 %v793, %v857
      %v864 = vadd.f32 %v794, %v837
      %v865 = vadd.f32 %v795, %v860
      %s866 = scalar_lea.vmem %s3, 64
      %v867 = vld [vmem:[%s866] sm:$0xff]
      %v868 = vrot.slane %v727, 2
      %v869 = vrot.slane %v728, 2
      %v870 = vsel %vm451, %v868, %v869
      %v871 = vrot.slane %v729, 2
      %v872 = vsel %vm451, %v869, %v871
      %874 = vst [vmem:[#allocation1] ss:$2 sm:$0xff] %v867
      %v875 = vld.sshfl [vmem:[#allocation1] sm:$0xff pattern:$0x75316420]
      %v876 = vld.sshfl [vmem:[#allocation1 + $0x8] sm:$0xff pattern:$0x75316420]
      %v877 = vsel %vm335, %v870, 0
      %v879 = vsel %vm335, %v872, 0
      %v881 = vsel %vm340, %v875, 0
      %v883 = vsel %vm340, %v876, 0
      %885 = vmatpush.msra.mxu0 0.0
      %886 = vmatpush.msra.mxu0 0.0
      %887 = vmatpush.msra.mxu0 0.0
      %888 = vmatpush.msra.mxu0 0.0
      %889 = vmatpush.msra.mxu0 0.0
      %890 = vmatpush.msra.mxu0 0.0
      %891 = vmatpush.msra.mxu0 0.0
      %892 = vmatpush.msra.mxu0 0.0
      %893 = vmatpush.msra.mxu0 0.0
      %894 = vmatpush.msra.mxu0 0.0
      %895 = vmatpush.msra.mxu0 0.0
      %896 = vmatpush.msra.mxu0 0.0
      %897 = vmatpush.msra.mxu0 0.0
      %898 = vmatpush.msra.mxu0 0.0
      %899 = vmatpush.msra.mxu0 0.0
      %900 = vmatpush.msra.mxu0 %v881
      %901 = vmatmul.f32.gmra.mxu0 %v877
      %v902 = vpop.f32.mrf.mxu0
      %v903 = vadd.f32 0.0, %v902
      %904 = vmatmul.f32.gmra.mxu0 %v879
      %v905 = vpop.f32.mrf.mxu0
      %v906 = vadd.f32 0.0, %v905
      %907 = vdwg.mxu0
      %908 = vmatpush.msra.mxu0 0.0
      %909 = vmatpush.msra.mxu0 0.0
      %910 = vmatpush.msra.mxu0 0.0
      %911 = vmatpush.msra.mxu0 0.0
      %912 = vmatpush.msra.mxu0 0.0
      %913 = vmatpush.msra.mxu0 0.0
      %914 = vmatpush.msra.mxu0 0.0
      %915 = vmatpush.msra.mxu0 0.0
      %916 = vmatpush.msra.mxu0 0.0
      %917 = vmatpush.msra.mxu0 0.0
      %918 = vmatpush.msra.mxu0 0.0
      %919 = vmatpush.msra.mxu0 0.0
      %920 = vmatpush.msra.mxu0 0.0
      %921 = vmatpush.msra.mxu0 0.0
      %922 = vmatpush.msra.mxu0 0.0
      %923 = vmatpush.msra.mxu0 %v883
      %924 = vmatmul.f32.gmra.mxu0 %v877
      %v925 = vpop.f32.mrf.mxu0
      %v926 = vadd.f32 0.0, %v925
      %927 = vmatmul.f32.gmra.mxu0 %v879
      %v928 = vpop.f32.mrf.mxu0
      %v929 = vadd.f32 0.0, %v928
      %930 = vdwg.mxu0
      %v931 = vadd.f32 %v862, %v903
      %v932 = vadd.f32 %v863, %v926
      %v933 = vadd.f32 %v864, %v906
      %v934 = vadd.f32 %v865, %v929
      %v935 = vmax.f32 %v931, 0.0
      %v936 = vmax.f32 %v933, 0.0
      %v937 = vadd.f32 %v935, %v932
      %v938 = vadd.f32 %v936, %v934
      %v939 = vmax.f32 %v937, 0.0
      %v940 = vmax.f32 %v938, 0.0
      %941 = vst [vmem:[%s315] sm:$0xff] %v939
      %942 = vst [vmem:[%s315 + $0x8] sm:$0xff] %v940
      %p943 = scmp.lt.s32.totalorder %s19, 1
      %s944 = scalar_select %p943, %s19, 1
      %p945 = scmp.lt.s32.totalorder %s20, 15
      %s946 = scalar_select %p945, %s20, 15
      %s947 = smul.addr %s946, 2
      %s948 = smul.addr %s944, 32
      %s949 = sadd.s32 %s947, %s948
      %s950 = smul.addr %s949, 8
      %s951 = scalar_lea.vmem %s4, %s950
      // Predicated region
      $region37: #{ipex_conv_add_relu.1} parent=35 // pred_check
        %p952 = pneg %p156
      $region38: #{ipex_conv_add_relu.1} parent=35 // pred_check_branch
        %954 = sbr.rel (%p952) target = $region40
      $region39: #{ipex_conv_add_relu.1} parent=35 // pred_region
        _
      $region40: #{ipex_conv_add_relu.1} parent=35 // pred_fallthru
        _
    $region36: #{ipex_conv_add_relu.1} parent=5 // pred_fallthru
      _
    %p955 = scmp.le.s32.totalorder 2, %s10
    // Predicated region
    $region41: #{ipex_conv_add_relu.1} parent=5 // pred_check
      %p956 = pneg %p955
    $region42: #{ipex_conv_add_relu.1} parent=5 // pred_check_branch
      %958 = sbr.rel (%p956) target = $region44
    $region43: #{ipex_conv_add_relu.1} parent=5 // pred_region
      %s959 = ssub.s32 %s10, 2
      // Predicated region
      $region45: #{ipex_conv_add_relu.1} parent=43 // pred_check
        %p960 = pneg %p162
      $region46: #{ipex_conv_add_relu.1} parent=43 // pred_check_branch
        %962 = sbr.rel (%p960) target = $region48
      $region47: #{ipex_conv_add_relu.1} parent=43 // pred_region
        %p963 = scmp.lt.s32.totalorder %s21, 1
        %s964 = scalar_select %p963, %s21, 1
        %p965 = scmp.lt.s32.totalorder %s22, 15
        %s966 = scalar_select %p965, %s22, 15
        %s967 = smul.addr %s966, 2
        %s968 = smul.addr %s964, 32
        %s969 = sadd.s32 %s967, %s968
        %s970 = smul.addr %s969, 8
        %s971 = scalar_lea.vmem %s4, %s970
      $region48: #{ipex_conv_add_relu.1} parent=43 // pred_fallthru
        _
    $region44: #{ipex_conv_add_relu.1} parent=5 // pred_fallthru
      _
  $region6: #{ipex_conv_add_relu.1} parent=0 // loop_footer
    %s14 = sadd.s32 1, %s10
  $region7: #{ipex_conv_add_relu.1} parent=0 // loop_footer_branch
    %9 = sbr.rel target = $region3
  $region8: #{ipex_conv_add_relu.1} parent=0 // loop_exit
    _

</llo_original>
